<compile_context>
chip_gen: v7x
topology: tpu7x:2x2x1
jax: 0.10.0
libtpu: 0.0.40
codegen_flags: <defaults>
</compile_context>

<pallas_src>
import functools

import jax
import jax.numpy as jnp
from jax.experimental import pallas as pl
from jax.experimental.pallas import tpu as pltpu


def _attention_kernel(v_ref, q_ref, wv_ref, bv_ref, wq_ref, bq_ref, wl_ref,
                      out_ref, *, k_valid):
    # v_ref : (TB, Kp, Vd) bf16   q_ref : (TB, Qd) bf16
    # wv_ref: (Vd, H) bf16        bv_ref: (1, H) f32
    # wq_ref: (Qd, H) bf16        bq_ref: (1, H) f32
    # wl_ref: (1, H)  f32         out_ref: (TB, Kp) f32
    TB, Kp, Vd = v_ref.shape
    H = wv_ref.shape[1]

    # v projection + ReLU: one large-M MXU matmul (M = TB*Kp), bf16 in / f32 acc.
    v2 = v_ref[...].reshape(TB * Kp, Vd)                # layout no-op: Kp % 8 == 0
    v_proj = jnp.dot(v2, wv_ref[...], preferred_element_type=jnp.float32)
    v_proj = jnp.maximum(v_proj + bv_ref[...], 0.0)     # (TB*Kp, H) f32

    # q projection + ReLU.
    q_proj = jnp.dot(q_ref[...], wq_ref[...], preferred_element_type=jnp.float32)
    q_proj = jnp.maximum(q_proj + bq_ref[...], 0.0)     # (TB, H) f32

    # Fold the final (H -> 1) linear's weight row into q_proj (VPU multiply),
    # then reduce over H on the XLU instead of a degenerate N=1 MXU matmul.
    # (bias bl is omitted: constant over k, softmax is shift-invariant)
    s = q_proj * wl_ref[...]                                                 # (TB, H)
    logits = jnp.sum(v_proj.reshape(TB, Kp, H) * s[:, None, :], axis=-1)     # (TB, Kp)

    # Mask the zero-padded k positions before the softmax.
    if k_valid < Kp:
        kidx = jax.lax.broadcasted_iota(jnp.int32, (TB, Kp), 1)
        logits = jnp.where(kidx < k_valid, logits, jnp.float32(-1e30))

    # Softmax over k (lane axis).
    m = jnp.max(logits, axis=-1, keepdims=True)
    e = jnp.exp(logits - m)
    denom = jnp.sum(e, axis=-1, keepdims=True)
    out_ref[...] = (e * pl.reciprocal(denom, approx=True)).astype(out_ref.dtype)


def _weight_norm(w, g):
    # weight_norm(..., dim=None): W_eff = g * W / ||W||_F   (g is a scalar).
    # The original FCNet / NewAttention use dim=None, i.e. a scalar g per layer.
    return g * w / jnp.sqrt(jnp.sum(w * w))


def _round_up(x, m):
    return -(-x // m) * m


def _vmem_capacity_bytes():
    try:
        return int(pltpu.get_tpu_info().vmem_capacity_bytes)
    except Exception:
        return 64 * 1024 * 1024   # conservative fallback (v7x per-TensorCore VMEM)


def _choose_tb(batch, Kp, Vd, Qd, H, vmem_budget_bytes, max_tb=512):
    """Largest batch tile (multiple of 8) that fits the per-step VMEM budget."""
    b8 = _round_up(max(batch, 1), 8)
    # Grid-invariant blocks (pipeline still double-buffers them -> count x2):
    #   bf16 wv/wq + f32 bv/bq/wl.
    fixed = 2 * 2 * (Vd * H + Qd * H) + 2 * 4 * 3 * H
    # Per batch row, per step:
    #   double-buffered bf16 v and q tiles, f32 v_proj + joint temp, f32 q_proj/s,
    #   double-buffered f32 output tile.
    per_row = (2 * Kp * Vd * 2            # v tile (bf16, 2 buffers)
               + 2 * Qd * 2               # q tile (bf16, 2 buffers)
               + 2 * Kp * H * 4           # v_proj + (v_proj * s) temp (f32)
               + 2 * H * 4                # q_proj, s (f32)
               + 2 * Kp * 4)              # out tile (f32, 2 buffers)
    avail = max(vmem_budget_bytes - fixed, 0)
    tb = (avail // per_row // 8) * 8
    tb = int(max(8, min(tb, max_tb, b8)))
    # NOTE: with dimension_semantics=("parallel",) a grid of >=2 blocks is
    # megacore-sharded automatically; on v7x an even block count is preferable,
    # but we do not force a split for small batches (single-TC chips prefer
    # the largest block that fits).
    return tb


def new_attention(v, q, params, max_tb=512):
    """v: [B, K, Vd] f32, q: [B, Qd] f32 -> attention weights [B, K, 1] f32."""
    B, K, Vd = v.shape
    _, Qd = q.shape

    # Apply weight-norm and pre-transpose weights (glue, plain JAX).
    # Matmul operands go to bf16 (MXU); biases / final weight row stay f32.
    wv = _weight_norm(params["wv"], params["gv"]).T.astype(jnp.bfloat16)   # (Vd, H)
    wq = _weight_norm(params["wq"], params["gq"]).T.astype(jnp.bfloat16)   # (Qd, H)
    wl = _weight_norm(params["wl"], params["gl"]).astype(jnp.float32)      # (1, H)
    H = wv.shape[1]
    bv = params["bv"].reshape(1, H).astype(jnp.float32)
    bq = params["bq"].reshape(1, H).astype(jnp.float32)

    # Pad K to a multiple of 8 so in-kernel reshapes are layout no-ops.
    Kp = _round_up(K, 8)
    if Kp != K:
        v = jnp.pad(v, ((0, 0), (0, Kp - K), (0, 0)))

    # VMEM-aware batch tiling.
    vmem_cap = _vmem_capacity_bytes()
    vmem_budget = min(int(0.45 * vmem_cap), 40 * 1024 * 1024)
    TB = _choose_tb(B, Kp, Vd, Qd, H, vmem_budget, max_tb=max_tb)
    B_pad = _round_up(B, TB)
    if B_pad != B:
        v = jnp.pad(v, ((0, B_pad - B), (0, 0), (0, 0)))
        q = jnp.pad(q, ((0, B_pad - B), (0, 0)))

    v = v.astype(jnp.bfloat16)
    q = q.astype(jnp.bfloat16)
    grid = (B_pad // TB,)

    grid_spec = pltpu.PrefetchScalarGridSpec(
        num_scalar_prefetch=0,
        grid=grid,
        in_specs=[
            pl.BlockSpec((TB, Kp, Vd), lambda b: (b, 0, 0)),  # v  (per-block tile)
            pl.BlockSpec((TB, Qd),     lambda b: (b, 0)),     # q  (per-block tile)
            pl.BlockSpec((Vd, H),      lambda b: (0, 0)),     # wv (grid-invariant)
            pl.BlockSpec((1, H),       lambda b: (0, 0)),     # bv
            pl.BlockSpec((Qd, H),      lambda b: (0, 0)),     # wq
            pl.BlockSpec((1, H),       lambda b: (0, 0)),     # bq
            pl.BlockSpec((1, H),       lambda b: (0, 0)),     # wl (row)
        ],
        out_specs=pl.BlockSpec((TB, Kp), lambda b: (b, 0)),   # lane-dense block
    )

    cost = pl.CostEstimate(
        flops=2 * B_pad * Kp * Vd * H + 2 * B_pad * Qd * H + 2 * B_pad * Kp * H,
        transcendentals=B_pad * Kp,
        bytes_accessed=2 * (B_pad * Kp * Vd + B_pad * Qd + Vd * H + Qd * H)
                       + 4 * (3 * H + B_pad * Kp),
    )

    out2d = pl.pallas_call(
        functools.partial(_attention_kernel, k_valid=K),
        out_shape=jax.ShapeDtypeStruct((B_pad, Kp), jnp.float32),
        grid_spec=grid_spec,
        compiler_params=pltpu.CompilerParams(
            dimension_semantics=("parallel",),
            vmem_limit_bytes=56 * 1024 * 1024,
        ),
        cost_estimate=cost,
    )(v, q, wv, bv, wq, bq, wl)

    # Strip batch/K padding and restore the [B, K, 1] layout (layout plumbing only).
    return out2d[:B, :K].reshape(B, K, 1)


def _reference(v, q, params):
    """Pure-JAX f32 reference of the PyTorch forward (eval mode)."""
    wv = _weight_norm(params["wv"], params["gv"])
    wq = _weight_norm(params["wq"], params["gq"])
    wl = _weight_norm(params["wl"], params["gl"])
    v_proj = jax.nn.relu(jnp.einsum("bkd,hd->bkh", v, wv) + params["bv"])
    q_proj = jax.nn.relu(q @ wq.T + params["bq"])[:, None, :]
    joint = v_proj * q_proj
    logits = jnp.einsum("bkh,oh->bko", joint, wl) + params["bl"]
    return jax.nn.softmax(logits, axis=1)


if __name__ == "__main__":
    # Small shapes consistent with the module.  NOTE: the module's final layer
    # is Linear(q_dim, 1) applied to a num_hid-dim tensor, so the forward only
    # works when q_dim == num_hid.  K=10 exercises the K-padding/masking path.
    B, K, Vd = 2, 10, 16
    Qd = H = 32

    key = jax.random.PRNGKey(0)
    keys = jax.random.split(key, 8)
    params = {
        # PyTorch Linear weight layout: (out_features, in_features)
        "wv": 0.1 * jax.random.normal(keys[0], (H, Vd), jnp.float32),
        "bv": 0.1 * jax.random.normal(keys[1], (H,), jnp.float32),
        "gv": jnp.float32(1.5),
        "wq": 0.1 * jax.random.normal(keys[2], (H, Qd), jnp.float32),
        "bq": 0.1 * jax.random.normal(keys[3], (H,), jnp.float32),
        "gq": jnp.float32(0.8),
        "wl": 0.1 * jax.random.normal(keys[4], (1, H), jnp.float32),
        "bl": 0.1 * jax.random.normal(keys[5], (1,), jnp.float32),
        "gl": jnp.float32(1.2),
    }
    v = jax.random.normal(keys[6], (B, K, Vd), jnp.float32)
    q = jax.random.normal(keys[7], (B, Qd), jnp.float32)

    out = jax.block_until_ready(new_attention(v, q, params))
    ref = _reference(v, q, params)

    assert out.shape == (B, K, 1)
    # bf16 MXU operands + approx reciprocal -> loosened tolerance vs f32 reference.
    assert jnp.allclose(out, ref, atol=2e-2, rtol=2e-2), "mismatch vs reference"
    assert jnp.allclose(jnp.sum(out, axis=1), 1.0, atol=5e-3), "softmax not normalized"
    print("KERNEL_OK")
</pallas_src>

<mosaic_0001>
module attributes {stable_mosaic.version = 11 : i64} {
  func.func @_attention_kernel(%arg0: i32, %arg1: memref<8x16x16xbf16, #tpu.memory_space<vmem>>, %arg2: memref<8x32xbf16, #tpu.memory_space<vmem>>, %arg3: memref<16x32xbf16, #tpu.memory_space<vmem>>, %arg4: memref<1x32xf32, #tpu.memory_space<vmem>>, %arg5: memref<32x32xbf16, #tpu.memory_space<vmem>>, %arg6: memref<1x32xf32, #tpu.memory_space<vmem>>, %arg7: memref<1x32xf32, #tpu.memory_space<vmem>>, %arg8: memref<8x16xf32, #tpu.memory_space<vmem>>) attributes {dimension_semantics = [#tpu.dimension_semantics<parallel>], iteration_bounds = array<i64: 1>, scalar_prefetch = 0 : i64, scratch_operands = 0 : i64, tpu.core_type = #tpu.core_type<tc>, window_params = [{transform_indices = @transform_0, window_bounds = array<i64: 8, 16, 16>}, {transform_indices = @transform_1, window_bounds = array<i64: 8, 32>}, {pipeline_mode = #tpu.pipeline_mode<synchronous>, transform_indices = @transform_2, window_bounds = array<i64: 16, 32>}, {pipeline_mode = #tpu.pipeline_mode<synchronous>, transform_indices = @transform_3, window_bounds = array<i64: 1, 32>}, {pipeline_mode = #tpu.pipeline_mode<synchronous>, transform_indices = @transform_4, window_bounds = array<i64: 32, 32>}, {pipeline_mode = #tpu.pipeline_mode<synchronous>, transform_indices = @transform_5, window_bounds = array<i64: 1, 32>}, {pipeline_mode = #tpu.pipeline_mode<synchronous>, transform_indices = @transform_6, window_bounds = array<i64: 1, 32>}, {transform_indices = @transform_7, window_bounds = array<i64: 8, 16>}]} {
    %c0 = arith.constant 0 : index
    %c0_0 = arith.constant 0 : index
    %c0_1 = arith.constant 0 : index
    %0 = vector.load %arg1[%c0, %c0_0, %c0_1] : memref<8x16x16xbf16, #tpu.memory_space<vmem>>, vector<8x16x16xbf16>
    %1 = vector.shape_cast %0 : vector<8x16x16xbf16> to vector<128x16xbf16>
    %c0_2 = arith.constant 0 : index
    %c0_3 = arith.constant 0 : index
    %2 = vector.load %arg3[%c0_2, %c0_3] : memref<16x32xbf16, #tpu.memory_space<vmem>>, vector<16x32xbf16>
    %cst = arith.constant dense<0.000000e+00> : vector<128x32xf32>
    %3 = tpu.matmul %1, %2, %cst {dimension_numbers = #tpu.dot_dimension_numbers<[1], [0], [0], [1], [0, 0, 1, 1], [], []>} : vector<128x16xbf16>, vector<16x32xbf16>, vector<128x32xf32> -> vector<128x32xf32>
    %c0_4 = arith.constant 0 : index
    %c0_5 = arith.constant 0 : index
    %4 = vector.load %arg4[%c0_4, %c0_5] : memref<1x32xf32, #tpu.memory_space<vmem>>, vector<1x32xf32>
    %5 = vector.broadcast %4 : vector<1x32xf32> to vector<128x32xf32>
    %6 = arith.addf %3, %5 : vector<128x32xf32>
    %cst_6 = arith.constant 0.000000e+00 : f32
    %7 = vector.broadcast %cst_6 : f32 to vector<128x32xf32>
    %8 = arith.maximumf %6, %7 : vector<128x32xf32>
    %c0_7 = arith.constant 0 : index
    %c0_8 = arith.constant 0 : index
    %9 = vector.load %arg2[%c0_7, %c0_8] : memref<8x32xbf16, #tpu.memory_space<vmem>>, vector<8x32xbf16>
    %c0_9 = arith.constant 0 : index
    %c0_10 = arith.constant 0 : index
    %10 = vector.load %arg5[%c0_9, %c0_10] : memref<32x32xbf16, #tpu.memory_space<vmem>>, vector<32x32xbf16>
    %cst_11 = arith.constant dense<0.000000e+00> : vector<8x32xf32>
    %11 = tpu.matmul %9, %10, %cst_11 {dimension_numbers = #tpu.dot_dimension_numbers<[1], [0], [0], [1], [0, 0, 1, 1], [], []>} : vector<8x32xbf16>, vector<32x32xbf16>, vector<8x32xf32> -> vector<8x32xf32>
    %c0_12 = arith.constant 0 : index
    %c0_13 = arith.constant 0 : index
    %12 = vector.load %arg6[%c0_12, %c0_13] : memref<1x32xf32, #tpu.memory_space<vmem>>, vector<1x32xf32>
    %13 = vector.broadcast %12 : vector<1x32xf32> to vector<8x32xf32>
    %14 = arith.addf %11, %13 : vector<8x32xf32>
    %cst_14 = arith.constant 0.000000e+00 : f32
    %15 = vector.broadcast %cst_14 : f32 to vector<8x32xf32>
    %16 = arith.maximumf %14, %15 : vector<8x32xf32>
    %c0_15 = arith.constant 0 : index
    %c0_16 = arith.constant 0 : index
    %17 = vector.load %arg7[%c0_15, %c0_16] : memref<1x32xf32, #tpu.memory_space<vmem>>, vector<1x32xf32>
    %18 = vector.broadcast %17 : vector<1x32xf32> to vector<8x32xf32>
    %19 = arith.mulf %16, %18 : vector<8x32xf32>
    %20 = vector.shape_cast %8 : vector<128x32xf32> to vector<8x16x32xf32>
    %21 = vector.shape_cast %19 : vector<8x32xf32> to vector<8x1x32xf32>
    %22 = vector.broadcast %21 : vector<8x1x32xf32> to vector<8x16x32xf32>
    %23 = arith.mulf %20, %22 : vector<8x16x32xf32>
    %cst_17 = arith.constant dense<0.000000e+00> : vector<8x16xf32>
    %24 = vector.multi_reduction <add>, %23, %cst_17 [2] : vector<8x16x32xf32> to vector<8x16xf32>
    %25 = tpu.iota {dimensions = array<i32: 1>} : vector<8x16xi32>
    %c10_i32 = arith.constant 10 : i32
    %26 = vector.broadcast %c10_i32 : i32 to vector<8x16xi32>
    %27 = arith.cmpi slt, %25, %26 : vector<8x16xi32>
    %cst_18 = arith.constant -1.000000e+30 : f32
    %28 = vector.broadcast %cst_18 : f32 to vector<8x16xf32>
    %29 = arith.select %27, %24, %28 : vector<8x16xi1>, vector<8x16xf32>
    %cst_19 = arith.constant dense<0xFF800000> : vector<8xf32>
    %30 = vector.multi_reduction <maximumf>, %29, %cst_19 [1] : vector<8x16xf32> to vector<8xf32>
    %31 = vector.shape_cast %30 : vector<8xf32> to vector<8x1xf32>
    %32 = vector.broadcast %31 : vector<8x1xf32> to vector<8x16xf32>
    %33 = arith.subf %29, %32 : vector<8x16xf32>
    %34 = math.exp %33 : vector<8x16xf32>
    %cst_20 = arith.constant dense<0.000000e+00> : vector<8xf32>
    %35 = vector.multi_reduction <add>, %34, %cst_20 [1] : vector<8x16xf32> to vector<8xf32>
    %36 = vector.shape_cast %35 : vector<8xf32> to vector<8x1xf32>
    %37 = tpu.reciprocal %36 {approx = true} : vector<8x1xf32> -> vector<8x1xf32>
    %38 = vector.broadcast %37 : vector<8x1xf32> to vector<8x16xf32>
    %39 = arith.mulf %34, %38 : vector<8x16xf32>
    %c0_21 = arith.constant 0 : index
    %c0_22 = arith.constant 0 : index
    %40 = vector.load %arg8[%c0_21, %c0_22] : memref<8x16xf32, #tpu.memory_space<vmem>>, vector<8x16xf32>
    tpu.vector_store %arg8[%c0_21, %c0_22], %39 {strides = array<i32>} : memref<8x16xf32, #tpu.memory_space<vmem>>, vector<8x16xf32>,
    return
  }
  func.func @transform_0(%arg0: i32) -> (i32, i32, i32) {
    %c0_i32 = arith.constant 0 : i32
    %c0_i32_0 = arith.constant 0 : i32
    %c0_i32_1 = arith.constant 0 : i32
    return %arg0, %c0_i32, %c0_i32_0 : i32, i32, i32
  }
  func.func @transform_1(%arg0: i32) -> (i32, i32) {
    %c0_i32 = arith.constant 0 : i32
    %c0_i32_0 = arith.constant 0 : i32
    return %arg0, %c0_i32 : i32, i32
  }
  func.func @transform_2(%arg0: i32) -> (i32, i32) {
    %c0_i32 = arith.constant 0 : i32
    %c0_i32_0 = arith.constant 0 : i32
    %c0_i32_1 = arith.constant 0 : i32
    return %c0_i32, %c0_i32_0 : i32, i32
  }
  func.func @transform_3(%arg0: i32) -> (i32, i32) {
    %c0_i32 = arith.constant 0 : i32
    %c0_i32_0 = arith.constant 0 : i32
    %c0_i32_1 = arith.constant 0 : i32
    return %c0_i32, %c0_i32_0 : i32, i32
  }
  func.func @transform_4(%arg0: i32) -> (i32, i32) {
    %c0_i32 = arith.constant 0 : i32
    %c0_i32_0 = arith.constant 0 : i32
    %c0_i32_1 = arith.constant 0 : i32
    return %c0_i32, %c0_i32_0 : i32, i32
  }
  func.func @transform_5(%arg0: i32) -> (i32, i32) {
    %c0_i32 = arith.constant 0 : i32
    %c0_i32_0 = arith.constant 0 : i32
    %c0_i32_1 = arith.constant 0 : i32
    return %c0_i32, %c0_i32_0 : i32, i32
  }
  func.func @transform_6(%arg0: i32) -> (i32, i32) {
    %c0_i32 = arith.constant 0 : i32
    %c0_i32_0 = arith.constant 0 : i32
    %c0_i32_1 = arith.constant 0 : i32
    return %c0_i32, %c0_i32_0 : i32, i32
  }
  func.func @transform_7(%arg0: i32) -> (i32, i32) {
    %c0_i32 = arith.constant 0 : i32
    %c0_i32_0 = arith.constant 0 : i32
    return %arg0, %c0_i32 : i32, i32
  }
}

</mosaic_0001>

<llo_original>
// kernel: tpu_custom_call.1
$region0: #{tpu_custom_call.1}
  #allocation0 [shape = 'u32[]', space=smem, size = 0x4, offset = 0x4, fixed_abs, tag = 'smem constant byte address 0x4 - core index']
  #allocation1 [shape = 'u32[144,128]{1,0:T(1,128)}', space=vmem, size = 0x12000, scoped, tag = 'internal scratch']
  %s0 = inlined_call_operand.hbm [shape: bf16[8,16,16], index: 0, kind: input, shape index: {}]
  %s1 = inlined_call_operand.hbm [shape: bf16[8,32], index: 1, kind: input, shape index: {}]
  %s2 = inlined_call_operand.hbm [shape: bf16[16,32], index: 2, kind: input, shape index: {}]
  %s3 = inlined_call_operand.vmem [shape: f32[1,32], index: 3, kind: input, shape index: {}]
  %s4 = inlined_call_operand.hbm [shape: bf16[32,32], index: 4, kind: input, shape index: {}]
  %s5 = inlined_call_operand.vmem [shape: f32[1,32], index: 5, kind: input, shape index: {}]
  %s6 = inlined_call_operand.vmem [shape: f32[1,32], index: 6, kind: input, shape index: {}]
  %s7 = inlined_call_operand.hbm [shape: f32[8,16], index: 7, kind: output, shape index: {}]
  %s8 = sld [smem:[#allocation0]]
  $region54: #{tpu_custom_call.1} parent=0
    _
  %s10 = ssub.s32 1, %s8
  %s11 = scalar_select 0, %s10, %s8
  $region1: #{tpu_custom_call.1} parent=0
    #allocation2 [shape = 'u8[32768]{0}', space=vmem, size = 0x8000, scoped, tag = 'input window, operand 0, single buffered']
    #allocation3 [shape = 's32[1]{0}', space=sflag, size = 0x4, scoped, tag = 'scoped memory for tpu_custom_call.1']
    #allocation4 [shape = 's32[1]{0}', space=sflag, size = 0x4, scoped, tag = 'scoped memory for tpu_custom_call.1']
    #allocation5 [shape = 'u8[2048]{0}', space=vmem, size = 0x800, scoped, tag = 'input window, operand 1, single buffered']
    #allocation6 [shape = 's32[1]{0}', space=sflag, size = 0x4, scoped, tag = 'scoped memory for tpu_custom_call.1']
    #allocation7 [shape = 'u8[4096]{0}', space=vmem, size = 0x1000, scoped, tag = 'input window, operand 2, single buffered']
    #allocation8 [shape = 'u8[8192]{0}', space=vmem, size = 0x2000, scoped, tag = 'input window, operand 4, single buffered']
    #allocation9 [shape = 's32[1]{0}', space=sflag, size = 0x4, scoped, tag = 'scoped memory for tpu_custom_call.1']
    #allocation10 [shape = 'u8[4096]{0}', space=vmem, size = 0x1000, scoped, tag = 'output window, operand 0, single buffered']
    %12 = vsyncpa [#allocation3], 0
    %13 = vsyncpa [#allocation6], 0
    %14 = vsyncpa [#allocation9], 0
    %15 = vsyncpa [#allocation4], 0
    // Predicated region
    $region2: #{tpu_custom_call.1} parent=1 // pred_check
      _
    $region3: #{tpu_custom_call.1} parent=1 // pred_check_branch
      %17 = sbr.rel (0) target = $region5
    $region4: #{tpu_custom_call.1} parent=1 // pred_region
      %s19 = ssub.s32 1024, 1024
      %20 = vsyncadd [#allocation3], %s19
      %s21 = sshll.u32 [#allocation2], 4
      %s22 = int_to_ptr.vmem [resolvable:$true] %s21
      %27 = dma.hbm_to_vmem [thread:$0]  %s0, 1024, %s22, [#allocation3], 64, 64, 4
    $region5: #{tpu_custom_call.1} parent=1 // pred_fallthru
      _
    // Predicated region
    $region6: #{tpu_custom_call.1} parent=1 // pred_check
      _
    $region7: #{tpu_custom_call.1} parent=1 // pred_check_branch
      %29 = sbr.rel (0) target = $region9
    $region8: #{tpu_custom_call.1} parent=1 // pred_region
      %s31 = ssub.s32 64, 64
      %32 = vsyncadd [#allocation6], %s31
      %s34 = sshll.u32 [#allocation5], 4
      %s35 = int_to_ptr.vmem [resolvable:$true] %s34
      %37 = dma.hbm_to_vmem [thread:$0]  %s1, 64, %s35, [#allocation6]
    $region9: #{tpu_custom_call.1} parent=1 // pred_fallthru
      _
    // Predicated region
    $region10: #{tpu_custom_call.1} parent=1 // pred_check
      _
    $region11: #{tpu_custom_call.1} parent=1 // pred_check_branch
      %39 = sbr.rel (0) target = $region13
    $region12: #{tpu_custom_call.1} parent=1 // pred_region
      %s41 = ssub.s32 128, 128
      %42 = vsyncadd [#allocation6], %s41
      %s43 = sshll.u32 [#allocation7], 4
      %s44 = int_to_ptr.vmem [resolvable:$true] %s43
      %49 = dma.hbm_to_vmem [thread:$0]  %s2, 128, %s44, [#allocation6], 64, 64, 4
    $region13: #{tpu_custom_call.1} parent=1 // pred_fallthru
      _
    // Predicated region
    $region14: #{tpu_custom_call.1} parent=1 // pred_check
      _
    $region15: #{tpu_custom_call.1} parent=1 // pred_check_branch
      %51 = sbr.rel (0) target = $region17
    $region16: #{tpu_custom_call.1} parent=1 // pred_region
      _
    $region17: #{tpu_custom_call.1} parent=1 // pred_fallthru
      _
    // Predicated region
    $region18: #{tpu_custom_call.1} parent=1 // pred_check
      _
    $region19: #{tpu_custom_call.1} parent=1 // pred_check_branch
      %53 = sbr.rel (0) target = $region21
    $region20: #{tpu_custom_call.1} parent=1 // pred_region
      %s55 = ssub.s32 256, 256
      %56 = vsyncadd [#allocation9], %s55
      %s57 = sshll.u32 [#allocation8], 4
      %s58 = int_to_ptr.vmem [resolvable:$true] %s57
      %63 = dma.hbm_to_vmem [thread:$0]  %s4, 256, %s58, [#allocation9], 64, 64, 4
    $region21: #{tpu_custom_call.1} parent=1 // pred_fallthru
      _
    // Predicated region
    $region22: #{tpu_custom_call.1} parent=1 // pred_check
      _
    $region23: #{tpu_custom_call.1} parent=1 // pred_check_branch
      %65 = sbr.rel (0) target = $region25
    $region24: #{tpu_custom_call.1} parent=1 // pred_region
      _
    $region25: #{tpu_custom_call.1} parent=1 // pred_fallthru
      _
    // Predicated region
    $region26: #{tpu_custom_call.1} parent=1 // pred_check
      _
    $region27: #{tpu_custom_call.1} parent=1 // pred_check_branch
      %67 = sbr.rel (0) target = $region29
    $region28: #{tpu_custom_call.1} parent=1 // pred_region
      _
    $region29: #{tpu_custom_call.1} parent=1 // pred_fallthru
      _
    // Predicated region
    $region30: #{tpu_custom_call.1} parent=1 // pred_check
      _
    $region31: #{tpu_custom_call.1} parent=1 // pred_check_branch
      %69 = sbr.rel (0) target = $region33
    $region32: #{tpu_custom_call.1} parent=1 // pred_region
      %70 = dma.done [#allocation3], 1024
    $region33: #{tpu_custom_call.1} parent=1 // pred_fallthru
      _
    // Predicated region
    $region34: #{tpu_custom_call.1} parent=1 // pred_check
      _
    $region35: #{tpu_custom_call.1} parent=1 // pred_check_branch
      %72 = sbr.rel (0) target = $region37
    $region36: #{tpu_custom_call.1} parent=1 // pred_region
      %73 = dma.done [#allocation6], 64
    $region37: #{tpu_custom_call.1} parent=1 // pred_fallthru
      _
    // Predicated region
    $region38: #{tpu_custom_call.1} parent=1 // pred_check
      _
    $region39: #{tpu_custom_call.1} parent=1 // pred_check_branch
      %75 = sbr.rel (0) target = $region41
    $region40: #{tpu_custom_call.1} parent=1 // pred_region
      %76 = dma.done [#allocation6], 128
    $region41: #{tpu_custom_call.1} parent=1 // pred_fallthru
      _
    // Predicated region
    $region42: #{tpu_custom_call.1} parent=1 // pred_check
      _
    $region43: #{tpu_custom_call.1} parent=1 // pred_check_branch
      %78 = sbr.rel (0) target = $region45
    $region44: #{tpu_custom_call.1} parent=1 // pred_region
      %79 = dma.done [#allocation9], 256
    $region45: #{tpu_custom_call.1} parent=1 // pred_fallthru
      _
    %v81 = vld [vmem:[#allocation2] sm:$0xf]
    %v82 = vld [vmem:[#allocation2 + $0x4] sm:$0xf]
    %v83 = vld [vmem:[#allocation2 + $0x8] sm:$0xf]
    %v84 = vld [vmem:[#allocation2 + $0xc] sm:$0xf]
    %v85 = vld [vmem:[#allocation2 + $0x10] sm:$0xf]
    %v86 = vld [vmem:[#allocation2 + $0x14] sm:$0xf]
    %v87 = vld [vmem:[#allocation2 + $0x18] sm:$0xf]
    %v88 = vld [vmem:[#allocation2 + $0x1c] sm:$0xf]
    %v89 = vld [vmem:[#allocation2 + $0x20] sm:$0xf]
    %v90 = vld [vmem:[#allocation2 + $0x24] sm:$0xf]
    %v91 = vld [vmem:[#allocation2 + $0x28] sm:$0xf]
    %v92 = vld [vmem:[#allocation2 + $0x2c] sm:$0xf]
    %v93 = vld [vmem:[#allocation2 + $0x30] sm:$0xf]
    %v94 = vld [vmem:[#allocation2 + $0x34] sm:$0xf]
    %v95 = vld [vmem:[#allocation2 + $0x38] sm:$0xf]
    %v96 = vld [vmem:[#allocation2 + $0x3c] sm:$0xf]
    %v97 = vld [vmem:[#allocation7] sm:$0xf]
    %v98 = vld [vmem:[#allocation7 + $0x4] sm:$0xf]
    %v99 = vld [vmem:[%s3] sm:$0x1]
    %v101 = vlaneseq
    %v102 = vshrl.u32 %v101, 7
    %v103 = vsub.s32 0, %v102
    %v104 = vrot.slane %v99, %v103
    %v122 = vunpack.c.l.b16 %v81
    %v123 = vunpack.c.l.b16 %v82
    %v124 = vunpack.c.l.b16 %v83
    %v125 = vunpack.c.l.b16 %v84
    %v126 = vunpack.c.l.b16 %v85
    %v127 = vunpack.c.l.b16 %v86
    %v128 = vunpack.c.l.b16 %v87
    %v129 = vunpack.c.l.b16 %v88
    %v130 = vunpack.c.l.b16 %v89
    %v131 = vunpack.c.l.b16 %v90
    %v132 = vunpack.c.l.b16 %v91
    %v133 = vunpack.c.l.b16 %v92
    %v134 = vunpack.c.l.b16 %v93
    %v135 = vunpack.c.l.b16 %v94
    %v136 = vunpack.c.l.b16 %v95
    %v137 = vunpack.c.l.b16 %v96
    %v138 = vpack.c.b16 %v123, %v122
    %v139 = vpack.c.b16 %v125, %v124
    %v140 = vpack.c.b16 %v127, %v126
    %v141 = vpack.c.b16 %v129, %v128
    %v142 = vpack.c.b16 %v131, %v130
    %v143 = vpack.c.b16 %v133, %v132
    %v144 = vpack.c.b16 %v135, %v134
    %v145 = vpack.c.b16 %v137, %v136
    %v148 = vunpack.c.l.b16 %v97
    %v149 = vunpack.c.l.b16 %v98
    %v150 = vpack.c.b16 %v149, %v148
    %vm152 = vcmask 130048
    %v154 = vsel %vm152, %v138, 0
    %v157 = vsel %vm152, %v139, 0
    %v160 = vsel %vm152, %v140, 0
    %v163 = vsel %vm152, %v141, 0
    %v166 = vsel %vm152, %v142, 0
    %v169 = vsel %vm152, %v143, 0
    %v172 = vsel %vm152, %v144, 0
    %v175 = vsel %vm152, %v145, 0
    %177 = vmatprep.subr.bf16.mxu0 0
    %178 = vmatpush1.bf16.msra.mxu0 %v150
    %179 = vmatprep.subr.bf16.mxu0 0
    %180 = vmatpush1.bf16.msra.mxu0 0
    %181 = vmatprep.subr.bf16.mxu0 0
    %182 = vmatpush1.bf16.msra.mxu0 0
    %183 = vmatprep.subr.bf16.mxu0 0
    %184 = vmatpush1.bf16.msra.mxu0 0
    %185 = vmatprep.subr.bf16.mxu0 0
    %186 = vmatpush1.bf16.msra.mxu0 0
    %187 = vmatprep.subr.bf16.mxu0 0
    %188 = vmatpush1.bf16.msra.mxu0 0
    %189 = vmatprep.subr.bf16.mxu0 0
    %190 = vmatpush1.bf16.msra.mxu0 0
    %191 = vmatprep.subr.bf16.mxu0 0
    %192 = vmatpush1.bf16.msra.mxu0 0
    %193 = vmatprep.subr.bf16.mxu0 0
    %194 = vmatpush1.bf16.msra.mxu0 0
    %195 = vmatprep.subr.bf16.mxu0 0
    %196 = vmatpush1.bf16.msra.mxu0 0
    %197 = vmatprep.subr.bf16.mxu0 0
    %198 = vmatpush1.bf16.msra.mxu0 0
    %199 = vmatprep.subr.bf16.mxu0 0
    %200 = vmatpush1.bf16.msra.mxu0 0
    %201 = vmatprep.subr.bf16.mxu0 0
    %202 = vmatpush1.bf16.msra.mxu0 0
    %203 = vmatprep.subr.bf16.mxu0 0
    %204 = vmatpush1.bf16.msra.mxu0 0
    %205 = vmatprep.subr.bf16.mxu0 0
    %206 = vmatpush1.bf16.msra.mxu0 0
    %207 = vmatprep.subr.bf16.mxu0 0
    %208 = vmatpush1.bf16.msra.mxu0 0
    %209 = vmatprep.mubr.bf16.mxu0 0
    %210 = vmatmul.mubr.bf16.gmra.mrb[0].mxu0 %v154
    %v211 = vpop.f32.mrb[0].mxu0
    %v212 = vadd.f32 %v104, %v211
    %v213 = vpop.f32.mrb[0].mxu0
    %v214 = vpop.f32.mrb[0].mxu0
    %v215 = vadd.f32 %v104, %v214
    %v216 = vpop.f32.mrb[0].mxu0
    %217 = vmatprep.mubr.bf16.mxu0 0
    %218 = vmatmul.mubr.bf16.gmra.mrb[0].mxu0 %v157
    %v219 = vpop.f32.mrb[0].mxu0
    %v220 = vadd.f32 %v104, %v219
    %v221 = vpop.f32.mrb[0].mxu0
    %v222 = vpop.f32.mrb[0].mxu0
    %v223 = vadd.f32 %v104, %v222
    %v224 = vpop.f32.mrb[0].mxu0
    %225 = vmatprep.mubr.bf16.mxu0 0
    %226 = vmatmul.mubr.bf16.gmra.mrb[0].mxu0 %v160
    %v227 = vpop.f32.mrb[0].mxu0
    %v228 = vadd.f32 %v104, %v227
    %v229 = vpop.f32.mrb[0].mxu0
    %v230 = vpop.f32.mrb[0].mxu0
    %v231 = vadd.f32 %v104, %v230
    %v232 = vpop.f32.mrb[0].mxu0
    %233 = vmatprep.mubr.bf16.mxu0 0
    %234 = vmatmul.mubr.bf16.gmra.mrb[0].mxu0 %v163
    %v235 = vpop.f32.mrb[0].mxu0
    %v236 = vadd.f32 %v104, %v235
    %v237 = vpop.f32.mrb[0].mxu0
    %v238 = vpop.f32.mrb[0].mxu0
    %v239 = vadd.f32 %v104, %v238
    %v240 = vpop.f32.mrb[0].mxu0
    %241 = vmatprep.mubr.bf16.mxu0 0
    %242 = vmatmul.mubr.bf16.gmra.mrb[0].mxu0 %v166
    %v243 = vpop.f32.mrb[0].mxu0
    %v244 = vadd.f32 %v104, %v243
    %v245 = vpop.f32.mrb[0].mxu0
    %v246 = vpop.f32.mrb[0].mxu0
    %v247 = vadd.f32 %v104, %v246
    %v248 = vpop.f32.mrb[0].mxu0
    %249 = vmatprep.mubr.bf16.mxu0 0
    %250 = vmatmul.mubr.bf16.gmra.mrb[0].mxu0 %v169
    %v251 = vpop.f32.mrb[0].mxu0
    %v252 = vadd.f32 %v104, %v251
    %v253 = vpop.f32.mrb[0].mxu0
    %v254 = vpop.f32.mrb[0].mxu0
    %v255 = vadd.f32 %v104, %v254
    %v256 = vpop.f32.mrb[0].mxu0
    %257 = vmatprep.mubr.bf16.mxu0 0
    %258 = vmatmul.mubr.bf16.gmra.mrb[0].mxu0 %v172
    %v259 = vpop.f32.mrb[0].mxu0
    %v260 = vadd.f32 %v104, %v259
    %v261 = vpop.f32.mrb[0].mxu0
    %v262 = vpop.f32.mrb[0].mxu0
    %v263 = vadd.f32 %v104, %v262
    %v264 = vpop.f32.mrb[0].mxu0
    %265 = vmatprep.mubr.bf16.mxu0 0
    %266 = vmatmul.mubr.bf16.gmra.mrb[0].mxu0 %v175
    %v267 = vpop.f32.mrb[0].mxu0
    %v268 = vadd.f32 %v104, %v267
    %v269 = vpop.f32.mrb[0].mxu0
    %v270 = vpop.f32.mrb[0].mxu0
    %v271 = vadd.f32 %v104, %v270
    %v272 = vpop.f32.mrb[0].mxu0
    %273 = vdwg.mxu0
    %v274 = vmax.f32 %v212, 0.0
    %v275 = vmax.f32 %v215, 0.0
    %v276 = vmax.f32 %v220, 0.0
    %v277 = vmax.f32 %v223, 0.0
    %v278 = vmax.f32 %v228, 0.0
    %v279 = vmax.f32 %v231, 0.0
    %v280 = vmax.f32 %v236, 0.0
    %v281 = vmax.f32 %v239, 0.0
    %v282 = vmax.f32 %v244, 0.0
    %v283 = vmax.f32 %v247, 0.0
    %v284 = vmax.f32 %v252, 0.0
    %v285 = vmax.f32 %v255, 0.0
    %v286 = vmax.f32 %v260, 0.0
    %v287 = vmax.f32 %v263, 0.0
    %v288 = vmax.f32 %v268, 0.0
    %v289 = vmax.f32 %v271, 0.0
    %v290 = vld [vmem:[#allocation5] sm:$0xf]
    %v291 = vld [vmem:[#allocation8] sm:$0xf]
    %v292 = vld [vmem:[#allocation8 + $0x4] sm:$0xf]
    %v293 = vld [vmem:[#allocation8 + $0x8] sm:$0xf]
    %v294 = vld [vmem:[#allocation8 + $0xc] sm:$0xf]
    %v295 = vld [vmem:[%s5] sm:$0x1]
    %v297 = vlaneseq
    %v298 = vshrl.u32 %v297, 7
    %v299 = vsub.s32 0, %v298
    %v300 = vrot.slane %v295, %v299
    %v306 = vunpack.c.l.b16 %v291
    %v307 = vunpack.c.l.b16 %v292
    %v308 = vunpack.c.l.b16 %v293
    %v309 = vunpack.c.l.b16 %v294
    %v310 = vpack.c.b16 %v307, %v306
    %v311 = vpack.c.b16 %v309, %v308
    %vm314 = vcmask 261120
    %v316 = vsel %vm314, %v290, 0
    %318 = vmatprep.subr.bf16.mxu0 0
    %319 = vmatpush1.bf16.msra.mxu0 %v310
    %320 = vmatprep.subr.bf16.mxu0 0
    %321 = vmatpush1.bf16.msra.mxu0 %v311
    %322 = vmatprep.subr.bf16.mxu0 0
    %323 = vmatpush1.bf16.msra.mxu0 0
    %324 = vmatprep.subr.bf16.mxu0 0
    %325 = vmatpush1.bf16.msra.mxu0 0
    %326 = vmatprep.subr.bf16.mxu0 0
    %327 = vmatpush1.bf16.msra.mxu0 0
    %328 = vmatprep.subr.bf16.mxu0 0
    %329 = vmatpush1.bf16.msra.mxu0 0
    %330 = vmatprep.subr.bf16.mxu0 0
    %331 = vmatpush1.bf16.msra.mxu0 0
    %332 = vmatprep.subr.bf16.mxu0 0
    %333 = vmatpush1.bf16.msra.mxu0 0
    %334 = vmatprep.subr.bf16.mxu0 0
    %335 = vmatpush1.bf16.msra.mxu0 0
    %336 = vmatprep.subr.bf16.mxu0 0
    %337 = vmatpush1.bf16.msra.mxu0 0
    %338 = vmatprep.subr.bf16.mxu0 0
    %339 = vmatpush1.bf16.msra.mxu0 0
    %340 = vmatprep.subr.bf16.mxu0 0
    %341 = vmatpush1.bf16.msra.mxu0 0
    %342 = vmatprep.subr.bf16.mxu0 0
    %343 = vmatpush1.bf16.msra.mxu0 0
    %344 = vmatprep.subr.bf16.mxu0 0
    %345 = vmatpush1.bf16.msra.mxu0 0
    %346 = vmatprep.subr.bf16.mxu0 0
    %347 = vmatpush1.bf16.msra.mxu0 0
    %348 = vmatprep.subr.bf16.mxu0 0
    %349 = vmatpush1.bf16.msra.mxu0 0
    %350 = vmatprep.mubr.bf16.mxu0 0
    %351 = vmatmul.mubr.bf16.gmra.mrb[0].mxu0 %v316
    %v352 = vpop.f32.mrb[0].mxu0
    %v353 = vadd.f32 %v300, %v352
    %v354 = vpop.f32.mrb[0].mxu0
    %v355 = vpop.f32.mrb[0].mxu0
    %v356 = vpop.f32.mrb[0].mxu0
    %357 = vdwg.mxu0
    %v358 = vmax.f32 %v353, 0.0
    %v359 = vld [vmem:[%s6] sm:$0x1]
    %v361 = vlaneseq
    %v362 = vshrl.u32 %v361, 7
    %v363 = vsub.s32 0, %v362
    %v364 = vrot.slane %v359, %v363
    %v366 = vmul.f32 %v358, %v364
    %v368 = vcombine.high %v366, %v366
    %v370 = vunpack.c.l.s4 1966171168
    %v371 = vunpack.c.0.s8 %v370
    %v372 = vlaneseq
    %v373 = vshrl.u32 %v372, 7
    %v374 = vsub.s32 %v371, %v373
    %v375 = vrot.slane %v366, %v374
    %v377 = vunpack.c.l.s4 1966171168
    %v378 = vunpack.c.0.s8 %v377
    %v379 = vlaneseq
    %v380 = vshrl.u32 %v379, 7
    %v381 = vsub.s32 %v378, %v380
    %v382 = vrot.slane %v368, %v381
    %v383 = vcombine.high %v375, %v375
    %v384 = vcombine.high %v382, %v382
    %v386 = vunpack.c.l.s4 1966171168
    %v387 = vunpack.c.0.s8 %v386
    %v388 = vlaneseq
    %v389 = vshrl.u32 %v388, 7
    %v390 = vsub.s32 %v387, %v389
    %v391 = vrot.slane %v375, %v390
    %v393 = vunpack.c.l.s4 1966171168
    %v394 = vunpack.c.0.s8 %v393
    %v395 = vlaneseq
    %v396 = vshrl.u32 %v395, 7
    %v397 = vsub.s32 %v394, %v396
    %v398 = vrot.slane %v382, %v397
    %v400 = vunpack.c.l.s4 1966171168
    %v401 = vunpack.c.0.s8 %v400
    %v402 = vlaneseq
    %v403 = vshrl.u32 %v402, 7
    %v404 = vsub.s32 %v401, %v403
    %v405 = vrot.slane %v383, %v404
    %v407 = vunpack.c.l.s4 1966171168
    %v408 = vunpack.c.0.s8 %v407
    %v409 = vlaneseq
    %v410 = vshrl.u32 %v409, 7
    %v411 = vsub.s32 %v408, %v410
    %v412 = vrot.slane %v384, %v411
    %v413 = vcombine.high %v391, %v391
    %v414 = vcombine.high %v398, %v398
    %v415 = vcombine.high %v405, %v405
    %v416 = vcombine.high %v412, %v412
    %v417 = vlaneseq
    %v418 = vshrl.u32 %v417, 7
    %v419 = vsub.s32 0, %v418
    %v420 = vrot.slane %v391, %v419
    %v421 = vlaneseq
    %v422 = vshrl.u32 %v421, 7
    %v423 = vsub.s32 0, %v422
    %v424 = vrot.slane %v405, %v423
    %v425 = vlaneseq
    %v426 = vshrl.u32 %v425, 7
    %v427 = vsub.s32 0, %v426
    %v428 = vrot.slane %v413, %v427
    %v429 = vlaneseq
    %v430 = vshrl.u32 %v429, 7
    %v431 = vsub.s32 0, %v430
    %v432 = vrot.slane %v415, %v431
    %v433 = vlaneseq
    %v434 = vshrl.u32 %v433, 7
    %v435 = vsub.s32 0, %v434
    %v436 = vrot.slane %v398, %v435
    %v437 = vlaneseq
    %v438 = vshrl.u32 %v437, 7
    %v439 = vsub.s32 0, %v438
    %v440 = vrot.slane %v412, %v439
    %v441 = vlaneseq
    %v442 = vshrl.u32 %v441, 7
    %v443 = vsub.s32 0, %v442
    %v444 = vrot.slane %v414, %v443
    %v445 = vlaneseq
    %v446 = vshrl.u32 %v445, 7
    %v447 = vsub.s32 0, %v446
    %v448 = vrot.slane %v416, %v447
    %v457 = vmul.f32 %v274, %v420
    %v458 = vmul.f32 %v275, %v420
    %v459 = vmul.f32 %v276, %v424
    %v460 = vmul.f32 %v277, %v424
    %v461 = vmul.f32 %v278, %v428
    %v462 = vmul.f32 %v279, %v428
    %v463 = vmul.f32 %v280, %v432
    %v464 = vmul.f32 %v281, %v432
    %v465 = vmul.f32 %v282, %v436
    %v466 = vmul.f32 %v283, %v436
    %v467 = vmul.f32 %v284, %v440
    %v468 = vmul.f32 %v285, %v440
    %v469 = vmul.f32 %v286, %v444
    %v470 = vmul.f32 %v287, %v444
    %v471 = vmul.f32 %v288, %v448
    %v472 = vmul.f32 %v289, %v448
    %v473 = vsel %vm314, %v457, 0.0
    %474 = vadd.xlane.f32.xlu0 %v473
    %v475 = vpop.xlane.xlu0 %474
    %v476 = vsel %vm314, %v458, 0.0
    %477 = vadd.xlane.f32.xlu0 %v476
    %v478 = vpop.xlane.xlu0 %477
    %v479 = vsel %vm314, %v459, 0.0
    %480 = vadd.xlane.f32.xlu0 %v479
    %v481 = vpop.xlane.xlu0 %480
    %v482 = vsel %vm314, %v460, 0.0
    %483 = vadd.xlane.f32.xlu0 %v482
    %v484 = vpop.xlane.xlu0 %483
    %v485 = vsel %vm314, %v461, 0.0
    %486 = vadd.xlane.f32.xlu0 %v485
    %v487 = vpop.xlane.xlu0 %486
    %v488 = vsel %vm314, %v462, 0.0
    %489 = vadd.xlane.f32.xlu0 %v488
    %v490 = vpop.xlane.xlu0 %489
    %v491 = vsel %vm314, %v463, 0.0
    %492 = vadd.xlane.f32.xlu0 %v491
    %v493 = vpop.xlane.xlu0 %492
    %v494 = vsel %vm314, %v464, 0.0
    %495 = vadd.xlane.f32.xlu0 %v494
    %v496 = vpop.xlane.xlu0 %495
    %v497 = vsel %vm314, %v465, 0.0
    %498 = vadd.xlane.f32.xlu0 %v497
    %v499 = vpop.xlane.xlu0 %498
    %v500 = vsel %vm314, %v466, 0.0
    %501 = vadd.xlane.f32.xlu0 %v500
    %v502 = vpop.xlane.xlu0 %501
    %v503 = vsel %vm314, %v467, 0.0
    %504 = vadd.xlane.f32.xlu0 %v503
    %v505 = vpop.xlane.xlu0 %504
    %v506 = vsel %vm314, %v468, 0.0
    %507 = vadd.xlane.f32.xlu0 %v506
    %v508 = vpop.xlane.xlu0 %507
    %v509 = vsel %vm314, %v469, 0.0
    %510 = vadd.xlane.f32.xlu0 %v509
    %v511 = vpop.xlane.xlu0 %510
    %v512 = vsel %vm314, %v470, 0.0
    %513 = vadd.xlane.f32.xlu0 %v512
    %v514 = vpop.xlane.xlu0 %513
    %v515 = vsel %vm314, %v471, 0.0
    %516 = vadd.xlane.f32.xlu0 %v515
    %v517 = vpop.xlane.xlu0 %516
    %v518 = vsel %vm314, %v472, 0.0
    %519 = vadd.xlane.f32.xlu0 %v518
    %v520 = vpop.xlane.xlu0 %519
    %v521 = vlaneseq
    %v522 = vand.u32 %v521, 127
    %vm523 = vcmp.lt.s32.totalorder %v522, 10
    %v540 = vlaneseq
    %v541 = vshrl.u32 %v540, 7
    %v542 = vsub.s32 %v522, %v541
    %v543 = vrot.slane %v475, %v542
    %v544 = vadd.s32 %v522, 4294967288
    %v545 = vlaneseq
    %v546 = vshrl.u32 %v545, 7
    %v547 = vsub.s32 %v544, %v546
    %v548 = vrot.slane %v478, %v547
    %vm549 = vcmask 130112
    %v550 = vsel %vm549, %v548, %v543
    %v551 = vlaneseq
    %v552 = vshrl.u32 %v551, 7
    %v553 = vsub.s32 %v522, %v552
    %v554 = vrot.slane %v481, %v553
    %v555 = vlaneseq
    %v556 = vshrl.u32 %v555, 7
    %v557 = vsub.s32 %v544, %v556
    %v558 = vrot.slane %v484, %v557
    %v559 = vsel %vm549, %v558, %v554
    %v560 = vlaneseq
    %v561 = vshrl.u32 %v560, 7
    %v562 = vsub.s32 %v522, %v561
    %v563 = vrot.slane %v487, %v562
    %v564 = vlaneseq
    %v565 = vshrl.u32 %v564, 7
    %v566 = vsub.s32 %v544, %v565
    %v567 = vrot.slane %v490, %v566
    %v568 = vsel %vm549, %v567, %v563
    %v569 = vlaneseq
    %v570 = vshrl.u32 %v569, 7
    %v571 = vsub.s32 %v522, %v570
    %v572 = vrot.slane %v493, %v571
    %v573 = vlaneseq
    %v574 = vshrl.u32 %v573, 7
    %v575 = vsub.s32 %v544, %v574
    %v576 = vrot.slane %v496, %v575
    %v577 = vsel %vm549, %v576, %v572
    %v578 = vlaneseq
    %v579 = vshrl.u32 %v578, 7
    %v580 = vsub.s32 %v522, %v579
    %v581 = vrot.slane %v499, %v580
    %v582 = vlaneseq
    %v583 = vshrl.u32 %v582, 7
    %v584 = vsub.s32 %v544, %v583
    %v585 = vrot.slane %v502, %v584
    %v586 = vsel %vm549, %v585, %v581
    %v587 = vlaneseq
    %v588 = vshrl.u32 %v587, 7
    %v589 = vsub.s32 %v522, %v588
    %v590 = vrot.slane %v505, %v589
    %v591 = vlaneseq
    %v592 = vshrl.u32 %v591, 7
    %v593 = vsub.s32 %v544, %v592
    %v594 = vrot.slane %v508, %v593
    %v595 = vsel %vm549, %v594, %v590
    %v596 = vlaneseq
    %v597 = vshrl.u32 %v596, 7
    %v598 = vsub.s32 %v522, %v597
    %v599 = vrot.slane %v511, %v598
    %v600 = vlaneseq
    %v601 = vshrl.u32 %v600, 7
    %v602 = vsub.s32 %v544, %v601
    %v603 = vrot.slane %v514, %v602
    %v604 = vsel %vm549, %v603, %v599
    %v605 = vlaneseq
    %v606 = vshrl.u32 %v605, 7
    %v607 = vsub.s32 %v522, %v606
    %v608 = vrot.slane %v517, %v607
    %v609 = vlaneseq
    %v610 = vshrl.u32 %v609, 7
    %v611 = vsub.s32 %v544, %v610
    %v612 = vrot.slane %v520, %v611
    %v613 = vsel %vm549, %v612, %v608
    %vm614 = vcmask 1041409
    %v615 = vsel %vm614, %v559, %v550
    %vm616 = vcmask 1042434
    %v617 = vsel %vm616, %v568, %v615
    %vm618 = vcmask 1043459
    %v619 = vsel %vm618, %v577, %v617
    %vm620 = vcmask 1044484
    %v621 = vsel %vm620, %v586, %v619
    %vm622 = vcmask 1045509
    %v623 = vsel %vm622, %v595, %v621
    %vm624 = vcmask 1046534
    %v625 = vsel %vm624, %v604, %v623
    %vm626 = vcmask 1047559
    %v627 = vsel %vm626, %v613, %v625
    %v629 = vsel %vm523, %v627, -1e+30
    %v630 = vsel %vm152, %v629, -inf
    %631 = vmax.xlane.f32.xlu0 %v630
    %v632 = vpop.xlane.xlu0 %631
    %v633 = vsub.f32 %v629, %v632
    %v634 = vmul.f32 %v633, 1.442695
    %v635 = vpow.pop %v634
    %v636 = vsel %vm152, %v635, 0.0
    %637 = vadd.xlane.f32.xlu0 %v636
    %v638 = vpop.xlane.xlu0 %637
    %v639 = vrcp.pop %v638
    %v640 = vmul.f32 %v635, %v639
    %641 = vst.msk [vmem:[#allocation10] sm:$0xff] %vm152, %v640
    // Predicated region
    $region46: #{tpu_custom_call.1} parent=1 // pred_check
      _
    $region47: #{tpu_custom_call.1} parent=1 // pred_check_branch
      %643 = sbr.rel (0) target = $region49
    $region48: #{tpu_custom_call.1} parent=1 // pred_region
      %s645 = ssub.s32 128, 128
      %646 = vsyncadd [#allocation4], %s645
      %s648 = sshll.u32 [#allocation10], 4
      %s649 = int_to_ptr.vmem [resolvable:$true] %s648
      %651 = dma.vmem_to_hbm [thread:$0]  %s649, 128, %s7, [#allocation4]
    $region49: #{tpu_custom_call.1} parent=1 // pred_fallthru
      _
    // Predicated region
    $region50: #{tpu_custom_call.1} parent=1 // pred_check
      _
    $region51: #{tpu_custom_call.1} parent=1 // pred_check_branch
      %653 = sbr.rel (0) target = $region53
    $region52: #{tpu_custom_call.1} parent=1 // pred_region
      %654 = dma.done [#allocation4], 128
    $region53: #{tpu_custom_call.1} parent=1 // pred_fallthru
      _
    %655 = vsyncpa [#allocation3], 1
    %656 = vsyncpa [#allocation6], 1
    %657 = vsyncpa [#allocation9], 1
    %658 = vsyncpa [#allocation4], 1

</llo_original>
